<compile_context>
chip_gen: v7x
topology: tpu7x:2x2x1
jax: 0.10.0
libtpu: 0.0.40
codegen_flags: <defaults>
</compile_context>

<pallas_src>
import numpy as np
import jax
import jax.numpy as jnp
from jax import lax
from jax.experimental import pallas as pl
from jax.experimental.pallas import tpu as pltpu

# 3x3 taps, (dh, dw) row-major -- must match the weight flattening order below.
_TAPS = tuple((dh, dw) for dh in (-1, 0, 1) for dw in (-1, 0, 1))


def _im2col_flat(x, masks, W, out_dtype):
    """x: (C, H*W) f32, masks: (9, H*W) {0,1} f32 -> (9*C, H*W) in out_dtype.

    Tap (dh, dw) of a 3x3 / pad-1 conv is a shift of the flattened spatial axis
    by dh*W + dw (a static lane roll) with out-of-image positions zeroed by the
    precomputed mask.
    """
    cols = []
    for t, (dh, dw) in enumerate(_TAPS):
        d = dh * W + dw
        shifted = x if d == 0 else jnp.roll(x, -d, axis=1)
        cols.append((shifted * masks[t:t + 1, :]).astype(out_dtype))
    return jnp.concatenate(cols, axis=0)


# ----------------------------------------------------------------------------
# Pass 1: fused conv3x3+relu -> conv3x3+relu, plus shortcut BN partial sums
# ----------------------------------------------------------------------------
def _make_fused_conv_kernel(H, W):
    def kernel(x_ref, masks_ref, w1_ref, b1_ref, w2_ref, b2_ref, ws_ref,
               c2_ref, stats_ref):
        x = x_ref[0]                           # (Cin, HW)  f32
        masks = masks_ref[...]                 # (9,  HW)   f32

        # conv1 (3x3, pad 1) + bias + ReLU: a single MXU matmul, K = 9*Cin.
        p1 = _im2col_flat(x, masks, W, jnp.bfloat16)           # (9*Cin, HW)
        c1 = jnp.dot(w1_ref[...], p1, preferred_element_type=jnp.float32)
        c1 = jnp.maximum(c1 + b1_ref[...], 0.0)                # (Cout, HW) f32

        # conv2 (3x3, pad 1) + bias + ReLU; c1 never leaves VMEM.
        p2 = _im2col_flat(c1, masks, W, jnp.bfloat16)          # (9*Cout, HW)
        c2 = jnp.dot(w2_ref[...], p2, preferred_element_type=jnp.float32)
        c2 = jnp.maximum(c2 + b2_ref[...], 0.0)
        c2_ref[0] = c2.astype(c2_ref.dtype)                    # lane-dense store

        # 1x1 shortcut: only per-image BN partial sums leave the kernel,
        # packed as one (Cout, 2) output = [sum, sum-of-squares].
        sc = jnp.dot(ws_ref[...], x.astype(jnp.bfloat16),
                     preferred_element_type=jnp.float32)       # (Cout, HW) f32
        s1 = jnp.sum(sc, axis=1, keepdims=True)
        s2 = jnp.sum(sc * sc, axis=1, keepdims=True)
        stats_ref[0] = jnp.concatenate([s1, s2], axis=1)       # (Cout, 2)

    return kernel


# ----------------------------------------------------------------------------
# Pass 2: shortcut recompute + BN (stats folded in-kernel) + add + ReLU + pool
# ----------------------------------------------------------------------------
def _make_bn_add_relu_pool_kernel(W, count, eps):
    def kernel(x_ref, c2_ref, ws_ref, stats_ref, gamma_ref, beta_ref, sel_ref,
               out_ref, pool_ref):
        # Fold BN batch statistics (training mode, biased variance) into a
        # per-channel affine, directly from the (N, Cout, 2) partial sums --
        # no tiny intermediate XLA ops between the two pallas_calls.
        tot = jnp.sum(stats_ref[...], axis=0)                  # (Cout, 2)
        mean = tot[:, 0:1] * (1.0 / count)                     # (Cout, 1)
        ex2 = tot[:, 1:2] * (1.0 / count)
        var = ex2 - mean * mean
        scale = gamma_ref[...] * lax.rsqrt(var + eps)          # EUP rsqrt
        shift = beta_ref[...] - mean * scale

        x = x_ref[0]                                           # (Cin, HW) f32
        # Recompute the cheap 1x1 shortcut instead of round-tripping sc to HBM.
        sc = jnp.dot(ws_ref[...], x.astype(jnp.bfloat16),
                     preferred_element_type=jnp.float32)       # (Cout, HW)
        y = c2_ref[0].astype(jnp.float32) + sc * scale + shift
        y = jnp.maximum(y, 0.0)
        out_ref[0] = y                                         # lane-dense store

        # 2x2 max-pool: pairwise max along flat shifts (-1 = next column,
        # -W = next row), then decimate the even-row/even-col anchors with a
        # 0/1 selection matmul (keeps HW on lanes; no lane-splitting reshape).
        m = jnp.maximum(y, jnp.roll(y, -1, axis=1))
        m = jnp.maximum(m, jnp.roll(m, -W, axis=1))
        pool_ref[0] = jnp.dot(m, sel_ref[...],
                              preferred_element_type=jnp.float32)

    return kernel


# ----------------------------------------------------------------------------
# Full forward, NCHW in / NCHW out
# ----------------------------------------------------------------------------
def downconv_forward(x_nchw, params, eps=1e-5):
    N, Cin, H, W = x_nchw.shape
    Cout = params["w1"].shape[0]
    assert H % 2 == 0 and W % 2 == 0, "2x2 max-pool assumes even H and W"
    HW = H * W
    Hp, Wp = H // 2, W // 2
    HWp = Hp * Wp

    x = x_nchw.reshape(N, Cin, HW)      # contiguous -> free, no transpose

    # Weights flattened to (Cout, 9*Cin) in (kh, kw, cin) order == _TAPS order;
    # MXU operands in bf16, biases / BN affine stay f32.
    w1f = jnp.transpose(params["w1"], (0, 2, 3, 1)).reshape(
        Cout, 9 * Cin).astype(jnp.bfloat16)
    w2f = jnp.transpose(params["w2"], (0, 2, 3, 1)).reshape(
        Cout, 9 * Cout).astype(jnp.bfloat16)
    wsf = params["ws"].reshape(Cout, Cin).astype(jnp.bfloat16)
    b1 = params["b1"].reshape(Cout, 1).astype(jnp.float32)
    b2 = params["b2"].reshape(Cout, 1).astype(jnp.float32)
    gamma = params["gamma"].reshape(Cout, 1).astype(jnp.float32)
    beta = params["beta"].reshape(Cout, 1).astype(jnp.float32)

    # Host-side constants: 3x3 boundary masks and the 2x2-pool selection matrix.
    ii = np.arange(HW)
    rows, cols = ii // W, ii % W
    masks = np.stack(
        [((rows + dh >= 0) & (rows + dh < H) &
          (cols + dw >= 0) & (cols + dw < W)).astype(np.float32)
         for dh, dw in _TAPS])                                  # (9, HW)
    jj = np.arange(HWp)
    anchors = 2 * (jj // Wp) * W + 2 * (jj % Wp)
    sel = np.zeros((HW, HWp), np.float32)
    sel[anchors, jj] = 1.0                                      # (HW, HWp)
    masks = jnp.asarray(masks)
    sel = jnp.asarray(sel)

    cparams = pltpu.CompilerParams(
        dimension_semantics=("parallel",),    # N=2 is even -> both v7x TCs busy
        vmem_limit_bytes=32 * 1024 * 1024)

    # ----- pass 1 -----
    # TODO(synk): at production H/W/C, add an H-strip grid axis with a 1-row
    # halo (manual DMA or Element-indexed blocks) so per-step VMEM fits v7x's
    # 64 MiB and the pipeline gets >2 steps; whole-image blocks are fine at 16x16.
    c2, stats = pl.pallas_call(
        _make_fused_conv_kernel(H, W),
        out_shape=(jax.ShapeDtypeStruct((N, Cout, HW), jnp.bfloat16),
                   jax.ShapeDtypeStruct((N, Cout, 2), jnp.float32)),
        grid=(N,),
        in_specs=[
            pl.BlockSpec((1, Cin, HW), lambda n: (n, 0, 0)),
            pl.BlockSpec((9, HW), lambda n: (0, 0)),
            pl.BlockSpec((Cout, 9 * Cin), lambda n: (0, 0)),
            pl.BlockSpec((Cout, 1), lambda n: (0, 0)),
            pl.BlockSpec((Cout, 9 * Cout), lambda n: (0, 0)),
            pl.BlockSpec((Cout, 1), lambda n: (0, 0)),
            pl.BlockSpec((Cout, Cin), lambda n: (0, 0)),
        ],
        out_specs=(
            pl.BlockSpec((1, Cout, HW), lambda n: (n, 0, 0)),
            pl.BlockSpec((1, Cout, 2), lambda n: (n, 0, 0)),
        ),
        compiler_params=cparams,
    )(x, masks, w1f, b1, w2f, b2, wsf)

    # ----- pass 2 -----
    count = float(N * H * W)
    out, pool = pl.pallas_call(
        _make_bn_add_relu_pool_kernel(W, count, eps),
        out_shape=(jax.ShapeDtypeStruct((N, Cout, HW), jnp.float32),
                   jax.ShapeDtypeStruct((N, Cout, HWp), jnp.float32)),
        grid=(N,),
        in_specs=[
            pl.BlockSpec((1, Cin, HW), lambda n: (n, 0, 0)),
            pl.BlockSpec((1, Cout, HW), lambda n: (n, 0, 0)),
            pl.BlockSpec((Cout, Cin), lambda n: (0, 0)),
            pl.BlockSpec((N, Cout, 2), lambda n: (0, 0, 0)),
            pl.BlockSpec((Cout, 1), lambda n: (0, 0)),
            pl.BlockSpec((Cout, 1), lambda n: (0, 0)),
            pl.BlockSpec((HW, HWp), lambda n: (0, 0)),
        ],
        out_specs=(
            pl.BlockSpec((1, Cout, HW), lambda n: (n, 0, 0)),
            pl.BlockSpec((1, Cout, HWp), lambda n: (n, 0, 0)),
        ),
        compiler_params=cparams,
    )(x, c2, wsf, stats, gamma, beta, sel)

    return out.reshape(N, Cout, H, W), pool.reshape(N, Cout, Hp, Wp)


# ----------------------------------------------------------------------------
# Pure-JAX f32 reference (NCHW) for verification
# ----------------------------------------------------------------------------
def reference_nchw(x, params, eps=1e-5):
    dn = ("NCHW", "OIHW", "NCHW")
    c1 = lax.conv_general_dilated(x, params["w1"], (1, 1), "SAME",
                                  dimension_numbers=dn)
    c1 = jnp.maximum(c1 + params["b1"][None, :, None, None], 0.0)
    c2 = lax.conv_general_dilated(c1, params["w2"], (1, 1), "SAME",
                                  dimension_numbers=dn)
    c2 = jnp.maximum(c2 + params["b2"][None, :, None, None], 0.0)
    sc = lax.conv_general_dilated(x, params["ws"], (1, 1), "SAME",
                                  dimension_numbers=dn)
    mean = sc.mean(axis=(0, 2, 3), keepdims=True)
    var = sc.var(axis=(0, 2, 3), keepdims=True)      # biased, as PyTorch BN uses
    scn = ((sc - mean) / jnp.sqrt(var + eps) * params["gamma"][None, :, None, None]
           + params["beta"][None, :, None, None])
    out = jnp.maximum(c2 + scn, 0.0)
    N, C, H, W = out.shape
    pool = out.reshape(N, C, H // 2, 2, W // 2, 2).max(axis=(3, 5))
    return out, pool


if __name__ == "__main__":
    N, Cin, Cout, H, W = 2, 4, 8, 16, 16

    key = jax.random.PRNGKey(0)
    k = jax.random.split(key, 6)
    params = {
        "w1": 0.1 * jax.random.normal(k[0], (Cout, Cin, 3, 3), jnp.float32),
        "b1": 0.1 * jax.random.normal(k[1], (Cout,), jnp.float32),
        "w2": 0.1 * jax.random.normal(k[2], (Cout, Cout, 3, 3), jnp.float32),
        "b2": 0.1 * jax.random.normal(k[3], (Cout,), jnp.float32),
        "ws": 0.1 * jax.random.normal(k[4], (Cout, Cin, 1, 1), jnp.float32),
        "gamma": jnp.ones((Cout,), jnp.float32),     # BatchNorm2d default init
        "beta": jnp.zeros((Cout,), jnp.float32),
    }
    x = jax.random.normal(k[5], (N, Cin, H, W), jnp.float32)

    out, pool = downconv_forward(x, params)
    out, pool = jax.block_until_ready((out, pool))

    ref_out, ref_pool = reference_nchw(x, params)

    assert out.shape == (N, Cout, H, W)
    assert pool.shape == (N, Cout, H // 2, W // 2)
    # bf16 MXU operands (f32 accumulation) -> tolerances loosened vs f32 reference.
    assert jnp.allclose(out, ref_out, atol=7e-2, rtol=7e-2), \
        float(jnp.max(jnp.abs(out - ref_out)))
    assert jnp.allclose(pool, ref_pool, atol=7e-2, rtol=7e-2), \
        float(jnp.max(jnp.abs(pool - ref_pool)))

    print("KERNEL_OK")
</pallas_src>

<mosaic_0001>
module attributes {stable_mosaic.version = 11 : i64} {
  func.func @kernel(%arg0: i32, %arg1: memref<1x4x256xf32, #tpu.memory_space<vmem>>, %arg2: memref<9x256xf32, #tpu.memory_space<vmem>>, %arg3: memref<8x36xbf16, #tpu.memory_space<vmem>>, %arg4: memref<8x1xf32, #tpu.memory_space<vmem>>, %arg5: memref<8x72xbf16, #tpu.memory_space<vmem>>, %arg6: memref<8x1xf32, #tpu.memory_space<vmem>>, %arg7: memref<8x4xbf16, #tpu.memory_space<vmem>>, %arg8: memref<1x8x256xbf16, #tpu.memory_space<vmem>>, %arg9: memref<1x8x2xf32, #tpu.memory_space<vmem>>) attributes {dimension_semantics = [#tpu.dimension_semantics<parallel>], iteration_bounds = array<i64: 2>, scalar_prefetch = 0 : i64, scratch_operands = 0 : i64, tpu.core_type = #tpu.core_type<tc>, window_params = [{transform_indices = @transform_0, window_bounds = array<i64: 1, 4, 256>}, {pipeline_mode = #tpu.pipeline_mode<synchronous>, transform_indices = @transform_1, window_bounds = array<i64: 9, 256>}, {pipeline_mode = #tpu.pipeline_mode<synchronous>, transform_indices = @transform_2, window_bounds = array<i64: 8, 36>}, {pipeline_mode = #tpu.pipeline_mode<synchronous>, transform_indices = @transform_3, window_bounds = array<i64: 8, 1>}, {pipeline_mode = #tpu.pipeline_mode<synchronous>, transform_indices = @transform_4, window_bounds = array<i64: 8, 72>}, {pipeline_mode = #tpu.pipeline_mode<synchronous>, transform_indices = @transform_5, window_bounds = array<i64: 8, 1>}, {pipeline_mode = #tpu.pipeline_mode<synchronous>, transform_indices = @transform_6, window_bounds = array<i64: 8, 4>}, {transform_indices = @transform_7, window_bounds = array<i64: 1, 8, 256>}, {transform_indices = @transform_8, window_bounds = array<i64: 1, 8, 2>}]} {
    %c0 = arith.constant 0 : index
    %c0_0 = arith.constant 0 : index
    %c0_1 = arith.constant 0 : index
    %0 = vector.load %arg1[%c0, %c0_0, %c0_1] : memref<1x4x256xf32, #tpu.memory_space<vmem>>, vector<1x4x256xf32>
    %1 = vector.shape_cast %0 : vector<1x4x256xf32> to vector<4x256xf32>
    %c0_2 = arith.constant 0 : index
    %c0_3 = arith.constant 0 : index
    %2 = vector.load %arg2[%c0_2, %c0_3] : memref<9x256xf32, #tpu.memory_space<vmem>>, vector<9x256xf32>
    %3 = vector.extract_strided_slice %1 {offsets = [0, 239], sizes = [4, 17], strides = [1, 1]} : vector<4x256xf32> to vector<4x17xf32>
    %4 = vector.extract_strided_slice %1 {offsets = [0, 0], sizes = [4, 239], strides = [1, 1]} : vector<4x256xf32> to vector<4x239xf32>
    %5 = tpu.concatenate %3, %4 in 1 : vector<4x17xf32>, vector<4x239xf32> -> vector<4x256xf32>
    %6 = vector.extract_strided_slice %2 {offsets = [0, 0], sizes = [1, 256], strides = [1, 1]} : vector<9x256xf32> to vector<1x256xf32>
    %7 = vector.broadcast %6 : vector<1x256xf32> to vector<4x256xf32>
    %8 = arith.mulf %5, %7 : vector<4x256xf32>
    %9 = arith.truncf %8 : vector<4x256xf32> to vector<4x256xbf16>
    %10 = vector.extract_strided_slice %1 {offsets = [0, 240], sizes = [4, 16], strides = [1, 1]} : vector<4x256xf32> to vector<4x16xf32>
    %11 = vector.extract_strided_slice %1 {offsets = [0, 0], sizes = [4, 240], strides = [1, 1]} : vector<4x256xf32> to vector<4x240xf32>
    %12 = tpu.concatenate %10, %11 in 1 : vector<4x16xf32>, vector<4x240xf32> -> vector<4x256xf32>
    %13 = vector.extract_strided_slice %2 {offsets = [1, 0], sizes = [1, 256], strides = [1, 1]} : vector<9x256xf32> to vector<1x256xf32>
    %14 = vector.broadcast %13 : vector<1x256xf32> to vector<4x256xf32>
    %15 = arith.mulf %12, %14 : vector<4x256xf32>
    %16 = arith.truncf %15 : vector<4x256xf32> to vector<4x256xbf16>
    %17 = vector.extract_strided_slice %1 {offsets = [0, 241], sizes = [4, 15], strides = [1, 1]} : vector<4x256xf32> to vector<4x15xf32>
    %18 = vector.extract_strided_slice %1 {offsets = [0, 0], sizes = [4, 241], strides = [1, 1]} : vector<4x256xf32> to vector<4x241xf32>
    %19 = tpu.concatenate %17, %18 in 1 : vector<4x15xf32>, vector<4x241xf32> -> vector<4x256xf32>
    %20 = vector.extract_strided_slice %2 {offsets = [2, 0], sizes = [1, 256], strides = [1, 1]} : vector<9x256xf32> to vector<1x256xf32>
    %21 = vector.broadcast %20 : vector<1x256xf32> to vector<4x256xf32>
    %22 = arith.mulf %19, %21 : vector<4x256xf32>
    %23 = arith.truncf %22 : vector<4x256xf32> to vector<4x256xbf16>
    %24 = vector.extract_strided_slice %1 {offsets = [0, 255], sizes = [4, 1], strides = [1, 1]} : vector<4x256xf32> to vector<4x1xf32>
    %25 = vector.extract_strided_slice %1 {offsets = [0, 0], sizes = [4, 255], strides = [1, 1]} : vector<4x256xf32> to vector<4x255xf32>
    %26 = tpu.concatenate %24, %25 in 1 : vector<4x1xf32>, vector<4x255xf32> -> vector<4x256xf32>
    %27 = vector.extract_strided_slice %2 {offsets = [3, 0], sizes = [1, 256], strides = [1, 1]} : vector<9x256xf32> to vector<1x256xf32>
    %28 = vector.broadcast %27 : vector<1x256xf32> to vector<4x256xf32>
    %29 = arith.mulf %26, %28 : vector<4x256xf32>
    %30 = arith.truncf %29 : vector<4x256xf32> to vector<4x256xbf16>
    %31 = vector.extract_strided_slice %2 {offsets = [4, 0], sizes = [1, 256], strides = [1, 1]} : vector<9x256xf32> to vector<1x256xf32>
    %32 = vector.broadcast %31 : vector<1x256xf32> to vector<4x256xf32>
    %33 = arith.mulf %1, %32 : vector<4x256xf32>
    %34 = arith.truncf %33 : vector<4x256xf32> to vector<4x256xbf16>
    %35 = vector.extract_strided_slice %1 {offsets = [0, 1], sizes = [4, 255], strides = [1, 1]} : vector<4x256xf32> to vector<4x255xf32>
    %36 = vector.extract_strided_slice %1 {offsets = [0, 0], sizes = [4, 1], strides = [1, 1]} : vector<4x256xf32> to vector<4x1xf32>
    %37 = tpu.concatenate %35, %36 in 1 : vector<4x255xf32>, vector<4x1xf32> -> vector<4x256xf32>
    %38 = vector.extract_strided_slice %2 {offsets = [5, 0], sizes = [1, 256], strides = [1, 1]} : vector<9x256xf32> to vector<1x256xf32>
    %39 = vector.broadcast %38 : vector<1x256xf32> to vector<4x256xf32>
    %40 = arith.mulf %37, %39 : vector<4x256xf32>
    %41 = arith.truncf %40 : vector<4x256xf32> to vector<4x256xbf16>
    %42 = vector.extract_strided_slice %1 {offsets = [0, 15], sizes = [4, 241], strides = [1, 1]} : vector<4x256xf32> to vector<4x241xf32>
    %43 = vector.extract_strided_slice %1 {offsets = [0, 0], sizes = [4, 15], strides = [1, 1]} : vector<4x256xf32> to vector<4x15xf32>
    %44 = tpu.concatenate %42, %43 in 1 : vector<4x241xf32>, vector<4x15xf32> -> vector<4x256xf32>
    %45 = vector.extract_strided_slice %2 {offsets = [6, 0], sizes = [1, 256], strides = [1, 1]} : vector<9x256xf32> to vector<1x256xf32>
    %46 = vector.broadcast %45 : vector<1x256xf32> to vector<4x256xf32>
    %47 = arith.mulf %44, %46 : vector<4x256xf32>
    %48 = arith.truncf %47 : vector<4x256xf32> to vector<4x256xbf16>
    %49 = vector.extract_strided_slice %1 {offsets = [0, 16], sizes = [4, 240], strides = [1, 1]} : vector<4x256xf32> to vector<4x240xf32>
    %50 = vector.extract_strided_slice %1 {offsets = [0, 0], sizes = [4, 16], strides = [1, 1]} : vector<4x256xf32> to vector<4x16xf32>
    %51 = tpu.concatenate %49, %50 in 1 : vector<4x240xf32>, vector<4x16xf32> -> vector<4x256xf32>
    %52 = vector.extract_strided_slice %2 {offsets = [7, 0], sizes = [1, 256], strides = [1, 1]} : vector<9x256xf32> to vector<1x256xf32>
    %53 = vector.broadcast %52 : vector<1x256xf32> to vector<4x256xf32>
    %54 = arith.mulf %51, %53 : vector<4x256xf32>
    %55 = arith.truncf %54 : vector<4x256xf32> to vector<4x256xbf16>
    %56 = vector.extract_strided_slice %1 {offsets = [0, 17], sizes = [4, 239], strides = [1, 1]} : vector<4x256xf32> to vector<4x239xf32>
    %57 = vector.extract_strided_slice %1 {offsets = [0, 0], sizes = [4, 17], strides = [1, 1]} : vector<4x256xf32> to vector<4x17xf32>
    %58 = tpu.concatenate %56, %57 in 1 : vector<4x239xf32>, vector<4x17xf32> -> vector<4x256xf32>
    %59 = vector.extract_strided_slice %2 {offsets = [8, 0], sizes = [1, 256], strides = [1, 1]} : vector<9x256xf32> to vector<1x256xf32>
    %60 = vector.broadcast %59 : vector<1x256xf32> to vector<4x256xf32>
    %61 = arith.mulf %58, %60 : vector<4x256xf32>
    %62 = arith.truncf %61 : vector<4x256xf32> to vector<4x256xbf16>
    %63 = tpu.concatenate %9, %16, %23, %30, %34, %41, %48, %55, %62 in 0 : vector<4x256xbf16>, vector<4x256xbf16>, vector<4x256xbf16>, vector<4x256xbf16>, vector<4x256xbf16>, vector<4x256xbf16>, vector<4x256xbf16>, vector<4x256xbf16>, vector<4x256xbf16> -> vector<36x256xbf16>
    %c0_4 = arith.constant 0 : index
    %c0_5 = arith.constant 0 : index
    %64 = vector.load %arg3[%c0_4, %c0_5] : memref<8x36xbf16, #tpu.memory_space<vmem>>, vector<8x36xbf16>
    %cst = arith.constant dense<0.000000e+00> : vector<8x256xf32>
    %65 = tpu.matmul %64, %63, %cst {dimension_numbers = #tpu.dot_dimension_numbers<[1], [0], [0], [1], [0, 0, 1, 1], [], []>} : vector<8x36xbf16>, vector<36x256xbf16>, vector<8x256xf32> -> vector<8x256xf32>
    %c0_6 = arith.constant 0 : index
    %c0_7 = arith.constant 0 : index
    %66 = vector.load %arg4[%c0_6, %c0_7] : memref<8x1xf32, #tpu.memory_space<vmem>>, vector<8x1xf32>
    %67 = vector.broadcast %66 : vector<8x1xf32> to vector<8x256xf32>
    %68 = arith.addf %65, %67 : vector<8x256xf32>
    %cst_8 = arith.constant 0.000000e+00 : f32
    %69 = vector.broadcast %cst_8 : f32 to vector<8x256xf32>
    %70 = arith.maximumf %68, %69 : vector<8x256xf32>
    %71 = vector.extract_strided_slice %70 {offsets = [0, 239], sizes = [8, 17], strides = [1, 1]} : vector<8x256xf32> to vector<8x17xf32>
    %72 = vector.extract_strided_slice %70 {offsets = [0, 0], sizes = [8, 239], strides = [1, 1]} : vector<8x256xf32> to vector<8x239xf32>
    %73 = tpu.concatenate %71, %72 in 1 : vector<8x17xf32>, vector<8x239xf32> -> vector<8x256xf32>
    %74 = vector.extract_strided_slice %2 {offsets = [0, 0], sizes = [1, 256], strides = [1, 1]} : vector<9x256xf32> to vector<1x256xf32>
    %75 = vector.broadcast %74 : vector<1x256xf32> to vector<8x256xf32>
    %76 = arith.mulf %73, %75 : vector<8x256xf32>
    %77 = arith.truncf %76 : vector<8x256xf32> to vector<8x256xbf16>
    %78 = vector.extract_strided_slice %70 {offsets = [0, 240], sizes = [8, 16], strides = [1, 1]} : vector<8x256xf32> to vector<8x16xf32>
    %79 = vector.extract_strided_slice %70 {offsets = [0, 0], sizes = [8, 240], strides = [1, 1]} : vector<8x256xf32> to vector<8x240xf32>
    %80 = tpu.concatenate %78, %79 in 1 : vector<8x16xf32>, vector<8x240xf32> -> vector<8x256xf32>
    %81 = vector.extract_strided_slice %2 {offsets = [1, 0], sizes = [1, 256], strides = [1, 1]} : vector<9x256xf32> to vector<1x256xf32>
    %82 = vector.broadcast %81 : vector<1x256xf32> to vector<8x256xf32>
    %83 = arith.mulf %80, %82 : vector<8x256xf32>
    %84 = arith.truncf %83 : vector<8x256xf32> to vector<8x256xbf16>
    %85 = vector.extract_strided_slice %70 {offsets = [0, 241], sizes = [8, 15], strides = [1, 1]} : vector<8x256xf32> to vector<8x15xf32>
    %86 = vector.extract_strided_slice %70 {offsets = [0, 0], sizes = [8, 241], strides = [1, 1]} : vector<8x256xf32> to vector<8x241xf32>
    %87 = tpu.concatenate %85, %86 in 1 : vector<8x15xf32>, vector<8x241xf32> -> vector<8x256xf32>
    %88 = vector.extract_strided_slice %2 {offsets = [2, 0], sizes = [1, 256], strides = [1, 1]} : vector<9x256xf32> to vector<1x256xf32>
    %89 = vector.broadcast %88 : vector<1x256xf32> to vector<8x256xf32>
    %90 = arith.mulf %87, %89 : vector<8x256xf32>
    %91 = arith.truncf %90 : vector<8x256xf32> to vector<8x256xbf16>
    %92 = vector.extract_strided_slice %70 {offsets = [0, 255], sizes = [8, 1], strides = [1, 1]} : vector<8x256xf32> to vector<8x1xf32>
    %93 = vector.extract_strided_slice %70 {offsets = [0, 0], sizes = [8, 255], strides = [1, 1]} : vector<8x256xf32> to vector<8x255xf32>
    %94 = tpu.concatenate %92, %93 in 1 : vector<8x1xf32>, vector<8x255xf32> -> vector<8x256xf32>
    %95 = vector.extract_strided_slice %2 {offsets = [3, 0], sizes = [1, 256], strides = [1, 1]} : vector<9x256xf32> to vector<1x256xf32>
    %96 = vector.broadcast %95 : vector<1x256xf32> to vector<8x256xf32>
    %97 = arith.mulf %94, %96 : vector<8x256xf32>
    %98 = arith.truncf %97 : vector<8x256xf32> to vector<8x256xbf16>
    %99 = vector.extract_strided_slice %2 {offsets = [4, 0], sizes = [1, 256], strides = [1, 1]} : vector<9x256xf32> to vector<1x256xf32>
    %100 = vector.broadcast %99 : vector<1x256xf32> to vector<8x256xf32>
    %101 = arith.mulf %70, %100 : vector<8x256xf32>
    %102 = arith.truncf %101 : vector<8x256xf32> to vector<8x256xbf16>
    %103 = vector.extract_strided_slice %70 {offsets = [0, 1], sizes = [8, 255], strides = [1, 1]} : vector<8x256xf32> to vector<8x255xf32>
    %104 = vector.extract_strided_slice %70 {offsets = [0, 0], sizes = [8, 1], strides = [1, 1]} : vector<8x256xf32> to vector<8x1xf32>
    %105 = tpu.concatenate %103, %104 in 1 : vector<8x255xf32>, vector<8x1xf32> -> vector<8x256xf32>
    %106 = vector.extract_strided_slice %2 {offsets = [5, 0], sizes = [1, 256], strides = [1, 1]} : vector<9x256xf32> to vector<1x256xf32>
    %107 = vector.broadcast %106 : vector<1x256xf32> to vector<8x256xf32>
    %108 = arith.mulf %105, %107 : vector<8x256xf32>
    %109 = arith.truncf %108 : vector<8x256xf32> to vector<8x256xbf16>
    %110 = vector.extract_strided_slice %70 {offsets = [0, 15], sizes = [8, 241], strides = [1, 1]} : vector<8x256xf32> to vector<8x241xf32>
    %111 = vector.extract_strided_slice %70 {offsets = [0, 0], sizes = [8, 15], strides = [1, 1]} : vector<8x256xf32> to vector<8x15xf32>
    %112 = tpu.concatenate %110, %111 in 1 : vector<8x241xf32>, vector<8x15xf32> -> vector<8x256xf32>
    %113 = vector.extract_strided_slice %2 {offsets = [6, 0], sizes = [1, 256], strides = [1, 1]} : vector<9x256xf32> to vector<1x256xf32>
    %114 = vector.broadcast %113 : vector<1x256xf32> to vector<8x256xf32>
    %115 = arith.mulf %112, %114 : vector<8x256xf32>
    %116 = arith.truncf %115 : vector<8x256xf32> to vector<8x256xbf16>
    %117 = vector.extract_strided_slice %70 {offsets = [0, 16], sizes = [8, 240], strides = [1, 1]} : vector<8x256xf32> to vector<8x240xf32>
    %118 = vector.extract_strided_slice %70 {offsets = [0, 0], sizes = [8, 16], strides = [1, 1]} : vector<8x256xf32> to vector<8x16xf32>
    %119 = tpu.concatenate %117, %118 in 1 : vector<8x240xf32>, vector<8x16xf32> -> vector<8x256xf32>
    %120 = vector.extract_strided_slice %2 {offsets = [7, 0], sizes = [1, 256], strides = [1, 1]} : vector<9x256xf32> to vector<1x256xf32>
    %121 = vector.broadcast %120 : vector<1x256xf32> to vector<8x256xf32>
    %122 = arith.mulf %119, %121 : vector<8x256xf32>
    %123 = arith.truncf %122 : vector<8x256xf32> to vector<8x256xbf16>
    %124 = vector.extract_strided_slice %70 {offsets = [0, 17], sizes = [8, 239], strides = [1, 1]} : vector<8x256xf32> to vector<8x239xf32>
    %125 = vector.extract_strided_slice %70 {offsets = [0, 0], sizes = [8, 17], strides = [1, 1]} : vector<8x256xf32> to vector<8x17xf32>
    %126 = tpu.concatenate %124, %125 in 1 : vector<8x239xf32>, vector<8x17xf32> -> vector<8x256xf32>
    %127 = vector.extract_strided_slice %2 {offsets = [8, 0], sizes = [1, 256], strides = [1, 1]} : vector<9x256xf32> to vector<1x256xf32>
    %128 = vector.broadcast %127 : vector<1x256xf32> to vector<8x256xf32>
    %129 = arith.mulf %126, %128 : vector<8x256xf32>
    %130 = arith.truncf %129 : vector<8x256xf32> to vector<8x256xbf16>
    %131 = tpu.concatenate %77, %84, %91, %98, %102, %109, %116, %123, %130 in 0 : vector<8x256xbf16>, vector<8x256xbf16>, vector<8x256xbf16>, vector<8x256xbf16>, vector<8x256xbf16>, vector<8x256xbf16>, vector<8x256xbf16>, vector<8x256xbf16>, vector<8x256xbf16> -> vector<72x256xbf16>
    %c0_9 = arith.constant 0 : index
    %c0_10 = arith.constant 0 : index
    %132 = vector.load %arg5[%c0_9, %c0_10] : memref<8x72xbf16, #tpu.memory_space<vmem>>, vector<8x72xbf16>
    %cst_11 = arith.constant dense<0.000000e+00> : vector<8x256xf32>
    %133 = tpu.matmul %132, %131, %cst_11 {dimension_numbers = #tpu.dot_dimension_numbers<[1], [0], [0], [1], [0, 0, 1, 1], [], []>} : vector<8x72xbf16>, vector<72x256xbf16>, vector<8x256xf32> -> vector<8x256xf32>
    %c0_12 = arith.constant 0 : index
    %c0_13 = arith.constant 0 : index
    %134 = vector.load %arg6[%c0_12, %c0_13] : memref<8x1xf32, #tpu.memory_space<vmem>>, vector<8x1xf32>
    %135 = vector.broadcast %134 : vector<8x1xf32> to vector<8x256xf32>
    %136 = arith.addf %133, %135 : vector<8x256xf32>
    %cst_14 = arith.constant 0.000000e+00 : f32
    %137 = vector.broadcast %cst_14 : f32 to vector<8x256xf32>
    %138 = arith.maximumf %136, %137 : vector<8x256xf32>
    %139 = arith.truncf %138 : vector<8x256xf32> to vector<8x256xbf16>
    %c0_15 = arith.constant 0 : index
    %c0_16 = arith.constant 0 : index
    %c0_17 = arith.constant 0 : index
    %140 = vector.load %arg8[%c0_15, %c0_16, %c0_17] : memref<1x8x256xbf16, #tpu.memory_space<vmem>>, vector<1x8x256xbf16>
    %141 = vector.shape_cast %140 : vector<1x8x256xbf16> to vector<8x256xbf16>
    %142 = vector.shape_cast %139 : vector<8x256xbf16> to vector<1x8x256xbf16>
    tpu.vector_store %arg8[%c0_15, %c0_16, %c0_17], %142 {strides = array<i32>} : memref<1x8x256xbf16, #tpu.memory_space<vmem>>, vector<1x8x256xbf16>,
    %c0_18 = arith.constant 0 : index
    %c0_19 = arith.constant 0 : index
    %143 = vector.load %arg7[%c0_18, %c0_19] : memref<8x4xbf16, #tpu.memory_space<vmem>>, vector<8x4xbf16>
    %144 = arith.truncf %1 : vector<4x256xf32> to vector<4x256xbf16>
    %cst_20 = arith.constant dense<0.000000e+00> : vector<8x256xf32>
    %145 = tpu.matmul %143, %144, %cst_20 {dimension_numbers = #tpu.dot_dimension_numbers<[1], [0], [0], [1], [0, 0, 1, 1], [], []>} : vector<8x4xbf16>, vector<4x256xbf16>, vector<8x256xf32> -> vector<8x256xf32>
    %cst_21 = arith.constant dense<0.000000e+00> : vector<8xf32>
    %146 = vector.multi_reduction <add>, %145, %cst_21 [1] : vector<8x256xf32> to vector<8xf32>
    %147 = vector.shape_cast %146 : vector<8xf32> to vector<8x1xf32>
    %148 = arith.mulf %145, %145 : vector<8x256xf32>
    %cst_22 = arith.constant dense<0.000000e+00> : vector<8xf32>
    %149 = vector.multi_reduction <add>, %148, %cst_22 [1] : vector<8x256xf32> to vector<8xf32>
    %150 = vector.shape_cast %149 : vector<8xf32> to vector<8x1xf32>
    %151 = tpu.concatenate %147, %150 in 1 : vector<8x1xf32>, vector<8x1xf32> -> vector<8x2xf32>
    %c0_23 = arith.constant 0 : index
    %c0_24 = arith.constant 0 : index
    %c0_25 = arith.constant 0 : index
    %152 = vector.load %arg9[%c0_23, %c0_24, %c0_25] : memref<1x8x2xf32, #tpu.memory_space<vmem>>, vector<1x8x2xf32>
    %153 = vector.shape_cast %152 : vector<1x8x2xf32> to vector<8x2xf32>
    %154 = vector.shape_cast %151 : vector<8x2xf32> to vector<1x8x2xf32>
    tpu.vector_store %arg9[%c0_23, %c0_24, %c0_25], %154 {strides = array<i32>} : memref<1x8x2xf32, #tpu.memory_space<vmem>>, vector<1x8x2xf32>,
    return
  }
  func.func @transform_0(%arg0: i32) -> (i32, i32, i32) {
    %c0_i32 = arith.constant 0 : i32
    %c0_i32_0 = arith.constant 0 : i32
    %c0_i32_1 = arith.constant 0 : i32
    return %arg0, %c0_i32, %c0_i32_0 : i32, i32, i32
  }
  func.func @transform_1(%arg0: i32) -> (i32, i32) {
    %c0_i32 = arith.constant 0 : i32
    %c0_i32_0 = arith.constant 0 : i32
    %c0_i32_1 = arith.constant 0 : i32
    return %c0_i32, %c0_i32_0 : i32, i32
  }
  func.func @transform_2(%arg0: i32) -> (i32, i32) {
    %c0_i32 = arith.constant 0 : i32
    %c0_i32_0 = arith.constant 0 : i32
    %c0_i32_1 = arith.constant 0 : i32
    return %c0_i32, %c0_i32_0 : i32, i32
  }
  func.func @transform_3(%arg0: i32) -> (i32, i32) {
    %c0_i32 = arith.constant 0 : i32
    %c0_i32_0 = arith.constant 0 : i32
    %c0_i32_1 = arith.constant 0 : i32
    return %c0_i32, %c0_i32_0 : i32, i32
  }
  func.func @transform_4(%arg0: i32) -> (i32, i32) {
    %c0_i32 = arith.constant 0 : i32
    %c0_i32_0 = arith.constant 0 : i32
    %c0_i32_1 = arith.constant 0 : i32
    return %c0_i32, %c0_i32_0 : i32, i32
  }
  func.func @transform_5(%arg0: i32) -> (i32, i32) {
    %c0_i32 = arith.constant 0 : i32
    %c0_i32_0 = arith.constant 0 : i32
    %c0_i32_1 = arith.constant 0 : i32
    return %c0_i32, %c0_i32_0 : i32, i32
  }
  func.func @transform_6(%arg0: i32) -> (i32, i32) {
    %c0_i32 = arith.constant 0 : i32
    %c0_i32_0 = arith.constant 0 : i32
    %c0_i32_1 = arith.constant 0 : i32
    return %c0_i32, %c0_i32_0 : i32, i32
  }
  func.func @transform_7(%arg0: i32) -> (i32, i32, i32) {
    %c0_i32 = arith.constant 0 : i32
    %c0_i32_0 = arith.constant 0 : i32
    %c0_i32_1 = arith.constant 0 : i32
    return %arg0, %c0_i32, %c0_i32_0 : i32, i32, i32
  }
  func.func @transform_8(%arg0: i32) -> (i32, i32, i32) {
    %c0_i32 = arith.constant 0 : i32
    %c0_i32_0 = arith.constant 0 : i32
    %c0_i32_1 = arith.constant 0 : i32
    return %arg0, %c0_i32, %c0_i32_0 : i32, i32, i32
  }
}

</mosaic_0001>

<llo_original>
// kernel: tpu_custom_call.1
$region0: #{tpu_custom_call.1}
  #allocation0 [shape = 'u32[]', space=smem, size = 0x4, offset = 0x4, fixed_abs, tag = 'smem constant byte address 0x4 - core index']
  #allocation1 [shape = 'u32[144,128]{1,0:T(1,128)}', space=vmem, size = 0x12000, scoped, tag = 'internal scratch']
  %s0 = inlined_call_operand.vmem [shape: f32[2,4,256], index: 0, kind: input, shape index: {}]
  %s1 = inlined_call_operand.hbm [shape: f32[9,256], index: 1, kind: input, shape index: {}]
  %s2 = inlined_call_operand.vmem [shape: bf16[8,36], index: 2, kind: input, shape index: {}]
  %s3 = inlined_call_operand.vmem [shape: f32[8,1], index: 3, kind: input, shape index: {}]
  %s4 = inlined_call_operand.vmem [shape: bf16[8,72], index: 4, kind: input, shape index: {}]
  %s5 = inlined_call_operand.vmem [shape: f32[8,1], index: 5, kind: input, shape index: {}]
  %s6 = inlined_call_operand.vmem [shape: bf16[8,4], index: 6, kind: input, shape index: {}]
  %s7 = inlined_call_operand.hbm [shape: bf16[2,8,256], index: 7, kind: output, shape index: {0}]
  %s8 = inlined_call_operand.vmem [shape: f32[2,8,2], index: 8, kind: output, shape index: {1}]
  %9 = xla_tuple %s7, %s8
  %s10 = sld [smem:[#allocation0]]
  $region73: #{tpu_custom_call.1} parent=0
    _
  %s12 = ssub.s32 1, %s10
  %s13 = scalar_select 0, %s12, %s10
  $region1: #{tpu_custom_call.1} parent=0
    #allocation2 [shape = 'u8[16384]{0}', space=vmem, size = 0x4000, scoped, tag = 'input window, operand 1, single buffered']
    #allocation3 [shape = 's32[2]{0}', space=sflag, size = 0x8, scoped, tag = 'scoped memory for tpu_custom_call.1']
    #allocation4 [shape = 's32[2]{0}', space=sflag, size = 0x8, scoped, tag = 'scoped memory for tpu_custom_call.1']
    #allocation5 [shape = 'u8[8192]{0}', space=vmem, size = 0x2000, scoped, tag = 'output window, operand 0']
    %14 = vsyncpa [#allocation3], 0
    %15 = vsyncpa [#allocation4], 0
    %s16 = scalar_lea.sflag [#allocation4], 1
    %17 = vsyncpa %s16, 0
    loop: start=0, step=1, limit=4
    $region2: #{tpu_custom_call.1} parent=1 // loop_pre_header
      _
    $region3: #{tpu_custom_call.1} parent=1 // loop_header
      %s19 = sphi 0, %s23
      %p20 = scmp.ge.s32.totalorder %s19, 4
      %s29 = sphi 0, %s31
      %s32 = sphi 0, %s29
      %s33 = sphi 0, %s32
      %s49 = sphi 0, %s33
      %s53 = sphi 0, %s53
      %s55 = sphi 0, %s53
      %s56 = sphi 0, %s55
      %s70 = sphi 0, %s56
      %s74 = sphi 0, %s74
      %s76 = sphi 0, %s74
      %s77 = sphi 0, %s76
      %s91 = sphi 0, %s77
      %s95 = sphi 0, %s95
      %s97 = sphi 0, %s95
      %s98 = sphi 0, %s97
      %s112 = sphi 0, %s98
      %s116 = sphi 0, %s116
      %s118 = sphi 0, %s116
      %s119 = sphi 0, %s118
      %s133 = sphi 0, %s119
      %s137 = sphi 0, %s137
      %s139 = sphi 0, %s137
      %s140 = sphi 0, %s139
      %s154 = sphi 0, %s140
      %s158 = sphi 0, %s158
      %s160 = sphi 0, %s158
      %s161 = sphi 0, %s160
      %s175 = sphi 0, %s161
      %s181 = sphi 0, %s183
      %s184 = sphi 0, %s181
      %s185 = sphi 0, %s184
      %s201 = sphi 0, %s185
      %s207 = sphi 0, %s209
      %s210 = sphi 0, %s207
      %s211 = sphi 0, %s210
      %s227 = sphi 0, %s211
    $region4: #{tpu_custom_call.1} parent=1 // loop_header_branch
      %22 = sbr.rel (%p20) target = $region8
    $region5: #{tpu_custom_call.1} parent=1 // loop_body
      %s24 = ssub.s32 %s19, 1
      %s25 = ssub.s32 %s19, 2
      %s26 = sadd.s32 %s19, 1
      %s27 = ssub.s32 %s19, %s26
      %p28 = scmp.eq.s32.totalorder %s27, 0
      %s30 = sadd.s32 %s29, 1
      %s31 = scalar_select %p28, %s29, %s30
      %p34 = pneg %p28
      %p35 = scmp.eq.s32.totalorder %s19, 1
      %p36 = por %p34, %p35
      %p37 = scmp.ne.s32.totalorder %s29, %s32
      %p38 = scmp.eq.s32.totalorder %s19, 0
      %p39 = por %p37, %p38
      %p40 = scmp.ne.s32.totalorder %s29, %s32
      %p41 = scmp.eq.s32.totalorder %s24, 1
      %p42 = por %p40, %p41
      %p43 = scmp.ne.s32.totalorder %s32, %s33
      %p44 = scmp.eq.s32.totalorder %s24, 0
      %p45 = por %p43, %p44
      %p46 = scmp.ne.s32.totalorder %s32, %s33
      %p47 = scmp.eq.s32.totalorder %s25, 1
      %p48 = por %p46, %p47
      %p50 = scmp.ne.s32.totalorder %s33, %s49
      %p51 = scmp.eq.s32.totalorder %s25, 0
      %p52 = por %p50, %p51
      %s54 = sadd.s32 %s53, 1
      %p57 = scmp.eq.s32.totalorder %s19, 1
      %p58 = scmp.ne.s32.totalorder %s53, %s55
      %p59 = scmp.eq.s32.totalorder %s19, 0
      %p60 = por %p58, %p59
      %p61 = scmp.ne.s32.totalorder %s53, %s55
      %p62 = scmp.eq.s32.totalorder %s24, 1
      %p63 = por %p61, %p62
      %p64 = scmp.ne.s32.totalorder %s55, %s56
      %p65 = scmp.eq.s32.totalorder %s24, 0
      %p66 = por %p64, %p65
      %p67 = scmp.ne.s32.totalorder %s55, %s56
      %p68 = scmp.eq.s32.totalorder %s25, 1
      %p69 = por %p67, %p68
      %p71 = scmp.ne.s32.totalorder %s56, %s70
      %p72 = scmp.eq.s32.totalorder %s25, 0
      %p73 = por %p71, %p72
      %s75 = sadd.s32 %s74, 1
      %p78 = scmp.eq.s32.totalorder %s19, 1
      %p79 = scmp.ne.s32.totalorder %s74, %s76
      %p80 = scmp.eq.s32.totalorder %s19, 0
      %p81 = por %p79, %p80
      %p82 = scmp.ne.s32.totalorder %s74, %s76
      %p83 = scmp.eq.s32.totalorder %s24, 1
      %p84 = por %p82, %p83
      %p85 = scmp.ne.s32.totalorder %s76, %s77
      %p86 = scmp.eq.s32.totalorder %s24, 0
      %p87 = por %p85, %p86
      %p88 = scmp.ne.s32.totalorder %s76, %s77
      %p89 = scmp.eq.s32.totalorder %s25, 1
      %p90 = por %p88, %p89
      %p92 = scmp.ne.s32.totalorder %s77, %s91
      %p93 = scmp.eq.s32.totalorder %s25, 0
      %p94 = por %p92, %p93
      %s96 = sadd.s32 %s95, 1
      %p99 = scmp.eq.s32.totalorder %s19, 1
      %p100 = scmp.ne.s32.totalorder %s95, %s97
      %p101 = scmp.eq.s32.totalorder %s19, 0
      %p102 = por %p100, %p101
      %p103 = scmp.ne.s32.totalorder %s95, %s97
      %p104 = scmp.eq.s32.totalorder %s24, 1
      %p105 = por %p103, %p104
      %p106 = scmp.ne.s32.totalorder %s97, %s98
      %p107 = scmp.eq.s32.totalorder %s24, 0
      %p108 = por %p106, %p107
      %p109 = scmp.ne.s32.totalorder %s97, %s98
      %p110 = scmp.eq.s32.totalorder %s25, 1
      %p111 = por %p109, %p110
      %p113 = scmp.ne.s32.totalorder %s98, %s112
      %p114 = scmp.eq.s32.totalorder %s25, 0
      %p115 = por %p113, %p114
      %s117 = sadd.s32 %s116, 1
      %p120 = scmp.eq.s32.totalorder %s19, 1
      %p121 = scmp.ne.s32.totalorder %s116, %s118
      %p122 = scmp.eq.s32.totalorder %s19, 0
      %p123 = por %p121, %p122
      %p124 = scmp.ne.s32.totalorder %s116, %s118
      %p125 = scmp.eq.s32.totalorder %s24, 1
      %p126 = por %p124, %p125
      %p127 = scmp.ne.s32.totalorder %s118, %s119
      %p128 = scmp.eq.s32.totalorder %s24, 0
      %p129 = por %p127, %p128
      %p130 = scmp.ne.s32.totalorder %s118, %s119
      %p131 = scmp.eq.s32.totalorder %s25, 1
      %p132 = por %p130, %p131
      %p134 = scmp.ne.s32.totalorder %s119, %s133
      %p135 = scmp.eq.s32.totalorder %s25, 0
      %p136 = por %p134, %p135
      %s138 = sadd.s32 %s137, 1
      %p141 = scmp.eq.s32.totalorder %s19, 1
      %p142 = scmp.ne.s32.totalorder %s137, %s139
      %p143 = scmp.eq.s32.totalorder %s19, 0
      %p144 = por %p142, %p143
      %p145 = scmp.ne.s32.totalorder %s137, %s139
      %p146 = scmp.eq.s32.totalorder %s24, 1
      %p147 = por %p145, %p146
      %p148 = scmp.ne.s32.totalorder %s139, %s140
      %p149 = scmp.eq.s32.totalorder %s24, 0
      %p150 = por %p148, %p149
      %p151 = scmp.ne.s32.totalorder %s139, %s140
      %p152 = scmp.eq.s32.totalorder %s25, 1
      %p153 = por %p151, %p152
      %p155 = scmp.ne.s32.totalorder %s140, %s154
      %p156 = scmp.eq.s32.totalorder %s25, 0
      %p157 = por %p155, %p156
      %s159 = sadd.s32 %s158, 1
      %p162 = scmp.eq.s32.totalorder %s19, 1
      %p163 = scmp.ne.s32.totalorder %s158, %s160
      %p164 = scmp.eq.s32.totalorder %s19, 0
      %p165 = por %p163, %p164
      %p166 = scmp.ne.s32.totalorder %s158, %s160
      %p167 = scmp.eq.s32.totalorder %s24, 1
      %p168 = por %p166, %p167
      %p169 = scmp.ne.s32.totalorder %s160, %s161
      %p170 = scmp.eq.s32.totalorder %s24, 0
      %p171 = por %p169, %p170
      %p172 = scmp.ne.s32.totalorder %s160, %s161
      %p173 = scmp.eq.s32.totalorder %s25, 1
      %p174 = por %p172, %p173
      %p176 = scmp.ne.s32.totalorder %s161, %s175
      %p177 = scmp.eq.s32.totalorder %s25, 0
      %p178 = por %p176, %p177
      %s179 = ssub.s32 %s19, %s26
      %p180 = scmp.eq.s32.totalorder %s179, 0
      %s182 = sadd.s32 %s181, 1
      %s183 = scalar_select %p180, %s181, %s182
      %p186 = pneg %p180
      %p187 = scmp.eq.s32.totalorder %s19, 1
      %p188 = por %p186, %p187
      %p189 = scmp.ne.s32.totalorder %s181, %s184
      %p190 = scmp.eq.s32.totalorder %s19, 0
      %p191 = por %p189, %p190
      %p192 = scmp.ne.s32.totalorder %s181, %s184
      %p193 = scmp.eq.s32.totalorder %s24, 1
      %p194 = por %p192, %p193
      %p195 = scmp.ne.s32.totalorder %s184, %s185
      %p196 = scmp.eq.s32.totalorder %s24, 0
      %p197 = por %p195, %p196
      %p198 = scmp.ne.s32.totalorder %s184, %s185
      %p199 = scmp.eq.s32.totalorder %s25, 1
      %p200 = por %p198, %p199
      %p202 = scmp.ne.s32.totalorder %s185, %s201
      %p203 = scmp.eq.s32.totalorder %s25, 0
      %p204 = por %p202, %p203
      %s205 = ssub.s32 %s19, %s26
      %p206 = scmp.eq.s32.totalorder %s205, 0
      %s208 = sadd.s32 %s207, 1
      %s209 = scalar_select %p206, %s207, %s208
      %p212 = pneg %p206
      %p213 = scmp.eq.s32.totalorder %s19, 1
      %p214 = por %p212, %p213
      %p215 = scmp.ne.s32.totalorder %s207, %s210
      %p216 = scmp.eq.s32.totalorder %s19, 0
      %p217 = por %p215, %p216
      %p218 = scmp.ne.s32.totalorder %s207, %s210
      %p219 = scmp.eq.s32.totalorder %s24, 1
      %p220 = por %p218, %p219
      %p221 = scmp.ne.s32.totalorder %s210, %s211
      %p222 = scmp.eq.s32.totalorder %s24, 0
      %p223 = por %p221, %p222
      %p224 = scmp.ne.s32.totalorder %s210, %s211
      %p225 = scmp.eq.s32.totalorder %s25, 1
      %p226 = por %p224, %p225
      %p228 = scmp.ne.s32.totalorder %s211, %s227
      %p229 = scmp.eq.s32.totalorder %s25, 0
      %p230 = por %p228, %p229
      %p231 = scmp.le.s32.totalorder 1, %s19
      %p232 = scmp.lt.s32.totalorder %s19, 3
      %p233 = pnand %p231, %p232
      %p234 = pneg %p233
      // Predicated region
      $region9: #{tpu_custom_call.1} parent=5 // pred_check
        _
      $region10: #{tpu_custom_call.1} parent=5 // pred_check_branch
        %236 = sbr.rel (%p233) target = $region12
      $region11: #{tpu_custom_call.1} parent=5 // pred_region
        %s237 = ssub.s32 %s19, 1
        // Predicated region
        $region13: #{tpu_custom_call.1} parent=11 // pred_check
          %p238 = pneg %p66
        $region14: #{tpu_custom_call.1} parent=11 // pred_check_branch
          %240 = sbr.rel (%p238) target = $region16
        $region15: #{tpu_custom_call.1} parent=11 // pred_region
          %s242 = ssub.s32 512, 512
          %243 = vsyncadd [#allocation3], %s242
          %s244 = sshll.u32 [#allocation2], 4
          %s245 = int_to_ptr.vmem [resolvable:$true] %s244
          %250 = dma.hbm_to_vmem [thread:$0]  %s1, 512, %s245, [#allocation3], 256, 256, 16
        $region16: #{tpu_custom_call.1} parent=11 // pred_fallthru
          _
        // Predicated region
        $region17: #{tpu_custom_call.1} parent=11 // pred_check
          %p251 = pneg %p87
        $region18: #{tpu_custom_call.1} parent=11 // pred_check_branch
          %253 = sbr.rel (%p251) target = $region20
        $region19: #{tpu_custom_call.1} parent=11 // pred_region
          _
        $region20: #{tpu_custom_call.1} parent=11 // pred_fallthru
          _
        // Predicated region
        $region21: #{tpu_custom_call.1} parent=11 // pred_check
          %p254 = pneg %p108
        $region22: #{tpu_custom_call.1} parent=11 // pred_check_branch
          %256 = sbr.rel (%p254) target = $region24
        $region23: #{tpu_custom_call.1} parent=11 // pred_region
          _
        $region24: #{tpu_custom_call.1} parent=11 // pred_fallthru
          _
        // Predicated region
        $region25: #{tpu_custom_call.1} parent=11 // pred_check
          %p257 = pneg %p129
        $region26: #{tpu_custom_call.1} parent=11 // pred_check_branch
          %259 = sbr.rel (%p257) target = $region28
        $region27: #{tpu_custom_call.1} parent=11 // pred_region
          _
        $region28: #{tpu_custom_call.1} parent=11 // pred_fallthru
          _
        // Predicated region
        $region29: #{tpu_custom_call.1} parent=11 // pred_check
          %p260 = pneg %p150
        $region30: #{tpu_custom_call.1} parent=11 // pred_check_branch
          %262 = sbr.rel (%p260) target = $region32
        $region31: #{tpu_custom_call.1} parent=11 // pred_region
          _
        $region32: #{tpu_custom_call.1} parent=11 // pred_fallthru
          _
        // Predicated region
        $region33: #{tpu_custom_call.1} parent=11 // pred_check
          %p263 = pneg %p171
        $region34: #{tpu_custom_call.1} parent=11 // pred_check_branch
          %265 = sbr.rel (%p263) target = $region36
        $region35: #{tpu_custom_call.1} parent=11 // pred_region
          _
        $region36: #{tpu_custom_call.1} parent=11 // pred_fallthru
          _
      $region12: #{tpu_custom_call.1} parent=5 // pred_fallthru
        _
      %p266 = scmp.lt.s32.totalorder %s19, 2
      // Predicated region
      $region37: #{tpu_custom_call.1} parent=5 // pred_check
        %p267 = pneg %p266
      $region38: #{tpu_custom_call.1} parent=5 // pred_check_branch
        %269 = sbr.rel (%p267) target = $region40
      $region39: #{tpu_custom_call.1} parent=5 // pred_region
        // Predicated region
        $region41: #{tpu_custom_call.1} parent=39 // pred_check
          %p270 = pneg %p39
        $region42: #{tpu_custom_call.1} parent=39 // pred_check_branch
          %272 = sbr.rel (%p270) target = $region44
        $region43: #{tpu_custom_call.1} parent=39 // pred_region
          %p273 = scmp.lt.s32.totalorder %s19, 1
          %s274 = scalar_select %p273, %s19, 1
          %s275 = smul.addr %s274, 2
          %s276 = smul.addr %s275, 4
          %s277 = scalar_lea.vmem %s0, %s276
        $region44: #{tpu_custom_call.1} parent=39 // pred_fallthru
          _
      $region40: #{tpu_custom_call.1} parent=5 // pred_fallthru
        _
      %p278 = scmp.le.s32.totalorder 1, %s19
      %p279 = scmp.lt.s32.totalorder %s19, 3
      %p280 = pnand %p278, %p279
      %p281 = pneg %p280
      // Predicated region
      $region45: #{tpu_custom_call.1} parent=5 // pred_check
        _
      $region46: #{tpu_custom_call.1} parent=5 // pred_check_branch
        %283 = sbr.rel (%p280) target = $region48
      $region47: #{tpu_custom_call.1} parent=5 // pred_region
        %s284 = ssub.s32 %s19, 1
        // Predicated region
        $region49: #{tpu_custom_call.1} parent=47 // pred_check
          %p285 = pneg %p66
        $region50: #{tpu_custom_call.1} parent=47 // pred_check_branch
          %287 = sbr.rel (%p285) target = $region52
        $region51: #{tpu_custom_call.1} parent=47 // pred_region
          %288 = dma.done [#allocation3], 512
        $region52: #{tpu_custom_call.1} parent=47 // pred_fallthru
          _
        %p289 = scmp.lt.s32.totalorder %s24, 1
        %s290 = scalar_select %p289, %s24, 1
        %s291 = smul.addr %s290, 2
        %s292 = smul.addr %s291, 4
        %s293 = scalar_lea.vmem %s0, %s292
        %p294 = pneg %p45
        %p295 = pneg %p42
        %p296 = pneg %p66
        %p297 = pneg %p63
        %p298 = pneg %p87
        %p299 = pneg %p84
        %p300 = pneg %p108
        %p301 = pneg %p105
        %p302 = pneg %p129
        %p303 = pneg %p126
        %p304 = pneg %p150
        %p305 = pneg %p147
        %p306 = pneg %p171
        %p307 = pneg %p168
        %p308 = pneg %p197
        %p309 = pneg %p194
        %s310 = sand.u32 %s184, 1
        %s311 = scalar_lea.sflag [#allocation4], %s310
        %s312 = sand.u32 %s184, 1
        %s313 = smul.addr %s312, 8
        %s314 = scalar_lea.vmem [#allocation5], %s313
        %p315 = pneg %p223
        %p316 = pneg %p220
        %p317 = scmp.lt.s32.totalorder %s24, 1
        %s318 = scalar_select %p317, %s24, 1
        %s319 = smul.addr %s318, 8
        %s320 = scalar_lea.vmem %s8, %s319
        %p321 = scmp.lt.s32.totalorder %s24, 1
        %s322 = scalar_select %p321, %s24, 1
        %s323 = smul.addr %s322, 2
        %s324 = smul.addr %s323, 4
        %s325 = scalar_lea.vmem %s0, %s324
        %p326 = scmp.lt.s32.totalorder %s24, 1
        %s327 = scalar_select %p326, %s24, 1
        %s328 = smul.addr %s327, 8
        %s329 = scalar_lea.vmem %s8, %s328
        %v331 = vld [vmem:[%s325] sm:$0xff]
        %v332 = vld [vmem:[#allocation2] sm:$0xff]
        %v333 = vld [vmem:[#allocation2 + $0x8] sm:$0xff]
        %v334 = vld [vmem:[#allocation2 + $0x10] sm:$0x1]
        %v335 = vld [vmem:[#allocation2 + $0x18] sm:$0x1]
        %v337 = vcombine.high %v331, %v331
        %338 = vrot.lane.b32.xlu0 %v337, 17
        %v339 = vpop.permute.xlu0 %338
        %341 = vrot.lane.b32.xlu0 %v331, 17
        %v342 = vpop.permute.xlu0 %341
        %vm343 = vcmask 138240
        %v344 = vsel %vm343, %v342, %v339
        %v347 = vsel %vm343, %v339, %v342
        %v348 = vlaneseq
        %v349 = vshrl.u32 %v348, 7
        %v350 = vsub.s32 0, %v349
        %v351 = vrot.slane %v332, %v350
        %v352 = vlaneseq
        %v353 = vshrl.u32 %v352, 7
        %v354 = vsub.s32 0, %v353
        %v355 = vrot.slane %v333, %v354
        %v356 = vmul.f32 %v347, %v351
        %v357 = vmul.f32 %v344, %v355
        %v358 = vpack.c.bf16 %v356, %v356
        %v359 = vpack.c.bf16 %v357, %v357
        %360 = vrot.lane.b32.xlu0 %v337, 16
        %v361 = vpop.permute.xlu0 %360
        %363 = vrot.lane.b32.xlu0 %v331, 16
        %v364 = vpop.permute.xlu0 %363
        %vm365 = vcmask 130048
        %v366 = vsel %vm365, %v364, %v361
        %v369 = vsel %vm365, %v361, %v364
        %v370 = vlaneseq
        %v371 = vshrl.u32 %v370, 7
        %v372 = vsub.s32 1, %v371
        %v373 = vrot.slane %v332, %v372
        %v374 = vlaneseq
        %v375 = vshrl.u32 %v374, 7
        %v376 = vsub.s32 1, %v375
        %v377 = vrot.slane %v333, %v376
        %v378 = vmul.f32 %v369, %v373
        %v379 = vmul.f32 %v366, %v377
        %v380 = vpack.c.bf16 %v378, %v378
        %v381 = vpack.c.bf16 %v379, %v379
        %382 = vrot.lane.b32.xlu0 %v337, 15
        %v383 = vpop.permute.xlu0 %382
        %385 = vrot.lane.b32.xlu0 %v331, 15
        %v386 = vpop.permute.xlu0 %385
        %vm387 = vcmask 121856
        %v388 = vsel %vm387, %v386, %v383
        %v391 = vsel %vm387, %v383, %v386
        %v392 = vlaneseq
        %v393 = vshrl.u32 %v392, 7
        %v394 = vsub.s32 2, %v393
        %v395 = vrot.slane %v332, %v394
        %v396 = vlaneseq
        %v397 = vshrl.u32 %v396, 7
        %v398 = vsub.s32 2, %v397
        %v399 = vrot.slane %v333, %v398
        %v400 = vmul.f32 %v391, %v395
        %v401 = vmul.f32 %v388, %v399
        %v402 = vpack.c.bf16 %v400, %v400
        %v403 = vpack.c.bf16 %v401, %v401
        %404 = vrot.lane.b32.xlu0 %v337, 1
        %v405 = vpop.permute.xlu0 %404
        %407 = vrot.lane.b32.xlu0 %v331, 1
        %v408 = vpop.permute.xlu0 %407
        %vm409 = vcmask 7168
        %v410 = vsel %vm409, %v408, %v405
        %v413 = vsel %vm409, %v405, %v408
        %v414 = vlaneseq
        %v415 = vshrl.u32 %v414, 7
        %v416 = vsub.s32 3, %v415
        %v417 = vrot.slane %v332, %v416
        %v418 = vlaneseq
        %v419 = vshrl.u32 %v418, 7
        %v420 = vsub.s32 3, %v419
        %v421 = vrot.slane %v333, %v420
        %v422 = vmul.f32 %v413, %v417
        %v423 = vmul.f32 %v410, %v421
        %v424 = vpack.c.bf16 %v422, %v422
        %v425 = vpack.c.bf16 %v423, %v423
        %v426 = vlaneseq
        %v427 = vshrl.u32 %v426, 7
        %v428 = vsub.s32 4, %v427
        %v429 = vrot.slane %v332, %v428
        %v430 = vlaneseq
        %v431 = vshrl.u32 %v430, 7
        %v432 = vsub.s32 4, %v431
        %v433 = vrot.slane %v333, %v432
        %v436 = vcombine.low %v429, %v433
        %v438 = vmul.f32 %v331, %v436
        %v440 = vcombine.high %v438, %v438
        %v442 = vpack.c.bf16 %v438, %v438
        %v443 = vpack.c.bf16 %v440, %v440
        %444 = vrot.lane.b32.xlu0 %v331, 127
        %v445 = vpop.permute.xlu0 %444
        %446 = vrot.lane.b32.xlu0 %v337, 127
        %v447 = vpop.permute.xlu0 %446
        %vm448 = vcmask 1039360
        %v449 = vsel %vm448, %v445, %v447
        %v453 = vsel %vm448, %v447, %v445
        %v454 = vlaneseq
        %v455 = vshrl.u32 %v454, 7
        %v456 = vsub.s32 5, %v455
        %v457 = vrot.slane %v332, %v456
        %v458 = vlaneseq
        %v459 = vshrl.u32 %v458, 7
        %v460 = vsub.s32 5, %v459
        %v461 = vrot.slane %v333, %v460
        %v462 = vmul.f32 %v449, %v457
        %v463 = vmul.f32 %v453, %v461
        %v464 = vpack.c.bf16 %v462, %v462
        %v465 = vpack.c.bf16 %v463, %v463
        %466 = vrot.lane.b32.xlu0 %v331, 113
        %v467 = vpop.permute.xlu0 %466
        %468 = vrot.lane.b32.xlu0 %v337, 113
        %v469 = vpop.permute.xlu0 %468
        %vm470 = vcmask 924672
        %v471 = vsel %vm470, %v467, %v469
        %v475 = vsel %vm470, %v469, %v467
        %v476 = vlaneseq
        %v477 = vshrl.u32 %v476, 7
        %v478 = vsub.s32 6, %v477
        %v479 = vrot.slane %v332, %v478
        %v480 = vlaneseq
        %v481 = vshrl.u32 %v480, 7
        %v482 = vsub.s32 6, %v481
        %v483 = vrot.slane %v333, %v482
        %v484 = vmul.f32 %v471, %v479
        %v485 = vmul.f32 %v475, %v483
        %v486 = vpack.c.bf16 %v484, %v484
        %v487 = vpack.c.bf16 %v485, %v485
        %488 = vrot.lane.b32.xlu0 %v331, 112
        %v489 = vpop.permute.xlu0 %488
        %490 = vrot.lane.b32.xlu0 %v337, 112
        %v491 = vpop.permute.xlu0 %490
        %vm492 = vcmask 916480
        %v493 = vsel %vm492, %v489, %v491
        %v497 = vsel %vm492, %v491, %v489
        %v498 = vlaneseq
        %v499 = vshrl.u32 %v498, 7
        %v500 = vsub.s32 7, %v499
        %v501 = vrot.slane %v332, %v500
        %v502 = vlaneseq
        %v503 = vshrl.u32 %v502, 7
        %v504 = vsub.s32 7, %v503
        %v505 = vrot.slane %v333, %v504
        %v506 = vmul.f32 %v493, %v501
        %v507 = vmul.f32 %v497, %v505
        %v508 = vpack.c.bf16 %v506, %v506
        %v509 = vpack.c.bf16 %v507, %v507
        %510 = vrot.lane.b32.xlu0 %v331, 111
        %v511 = vpop.permute.xlu0 %510
        %512 = vrot.lane.b32.xlu0 %v337, 111
        %v513 = vpop.permute.xlu0 %512
        %vm514 = vcmask 908288
        %v515 = vsel %vm514, %v511, %v513
        %v519 = vsel %vm514, %v513, %v511
        %v520 = vlaneseq
        %v521 = vshrl.u32 %v520, 7
        %v522 = vsub.s32 0, %v521
        %v523 = vrot.slane %v334, %v522
        %v524 = vlaneseq
        %v525 = vshrl.u32 %v524, 7
        %v526 = vsub.s32 0, %v525
        %v527 = vrot.slane %v335, %v526
        %v528 = vmul.f32 %v515, %v523
        %v529 = vmul.f32 %v519, %v527
        %v530 = vpack.c.bf16 %v528, %v528
        %v531 = vpack.c.bf16 %v529, %v529
        %v534 = vrot.slane %v380, 6
        %v535 = vrot.slane %v381, 6
        %v538 = vrot.slane %v402, 4
        %v539 = vrot.slane %v403, 4
        %v542 = vrot.slane %v424, 2
        %v543 = vrot.slane %v425, 2
        %v546 = vrot.slane %v464, 6
        %v547 = vrot.slane %v465, 6
        %v550 = vrot.slane %v486, 4
        %v551 = vrot.slane %v487, 4
        %v554 = vrot.slane %v508, 2
        %v555 = vrot.slane %v509, 2
        %vm556 = vcmask 1041408
        %v559 = vsel %vm556, %v358, %v534
        %v562 = vsel %vm556, %v359, %v535
        %vm563 = vcmask 1043456
        %v565 = vsel %vm563, %v559, %v538
        %v567 = vsel %vm563, %v562, %v539
        %vm568 = vcmask 1045504
        %v570 = vsel %vm568, %v565, %v542
        %v573 = vsel %vm568, %v567, %v543
        %v577 = vsel %vm556, %v442, %v546
        %v580 = vsel %vm556, %v443, %v547
        %v582 = vsel %vm563, %v577, %v550
        %v584 = vsel %vm563, %v580, %v551
        %v586 = vsel %vm568, %v582, %v554
        %v589 = vsel %vm568, %v584, %v555
        %v591 = vld [vmem:[%s2] sm:$0xf]
        %v592 = vld [vmem:[%s3] sm:$0xff]
        %594 = vset.pattern.permute.xlu0 0
        %595 = vperm.xlu0 %594, %v592
        %v596 = vpop.permute.xlu0 %595
        %vm598 = vcmask 293888
        %v600 = vsel %vm598, %v591, 0
        %v603 = vsel %vm556, %v530, 0
        %v606 = vsel %vm556, %v531, 0
        %608 = vmatprep.subr.bf16.mxu0 %v573
        %609 = vmatpush1.bf16.msra.mxu0 %v570
        %610 = vmatprep.subr.bf16.mxu0 %v589
        %611 = vmatpush1.bf16.msra.mxu0 %v586
        %612 = vmatprep.subr.bf16.mxu0 %v606
        %613 = vmatpush1.bf16.msra.mxu0 %v603
        %614 = vmatprep.subr.bf16.mxu0 0
        %615 = vmatpush1.bf16.msra.mxu0 0
        %616 = vmatprep.subr.bf16.mxu0 0
        %617 = vmatpush1.bf16.msra.mxu0 0
        %618 = vmatprep.subr.bf16.mxu0 0
        %619 = vmatpush1.bf16.msra.mxu0 0
        %620 = vmatprep.subr.bf16.mxu0 0
        %621 = vmatpush1.bf16.msra.mxu0 0
        %622 = vmatprep.subr.bf16.mxu0 0
        %623 = vmatpush1.bf16.msra.mxu0 0
        %624 = vmatprep.subr.bf16.mxu0 0
        %625 = vmatpush1.bf16.msra.mxu0 0
        %626 = vmatprep.subr.bf16.mxu0 0
        %627 = vmatpush1.bf16.msra.mxu0 0
        %628 = vmatprep.subr.bf16.mxu0 0
        %629 = vmatpush1.bf16.msra.mxu0 0
        %630 = vmatprep.subr.bf16.mxu0 0
        %631 = vmatpush1.bf16.msra.mxu0 0
        %632 = vmatprep.subr.bf16.mxu0 0
        %633 = vmatpush1.bf16.msra.mxu0 0
        %634 = vmatprep.subr.bf16.mxu0 0
        %635 = vmatpush1.bf16.msra.mxu0 0
        %636 = vmatprep.subr.bf16.mxu0 0
        %637 = vmatpush1.bf16.msra.mxu0 0
        %638 = vmatprep.subr.bf16.mxu0 0
        %639 = vmatpush1.bf16.msra.mxu0 0
        %640 = vmatprep.mubr.bf16.mxu0 0
        %641 = vmatmul.mubr.bf16.gmra.mrb[0].mxu0 %v600
        %v642 = vpop.f32.mrb[0].mxu0
        %v643 = vadd.f32 %v596, %v642
        %v644 = vpop.f32.mrb[0].mxu0
        %v645 = vadd.f32 %v596, %v644
        %v646 = vpop.f32.mrb[0].mxu0
        %v647 = vpop.f32.mrb[0].mxu0
        %648 = vdwg.mxu0
        %v649 = vmax.f32 %v643, 0.0
        %v650 = vmax.f32 %v645, 0.0
        %652 = vrot.lane.b32.xlu0 %v650, 17
        %v653 = vpop.permute.xlu0 %652
        %656 = vrot.lane.b32.xlu0 %v649, 17
        %v657 = vpop.permute.xlu0 %656
        %v658 = vsel %vm343, %v657, %v653
        %v661 = vsel %vm343, %v653, %v657
        %v662 = vmul.f32 %v661, %v351
        %v663 = vmul.f32 %v658, %v355
        %v664 = vpack.c.bf16 %v662, %v662
        %v665 = vpack.c.bf16 %v663, %v663
        %666 = vrot.lane.b32.xlu0 %v650, 16
        %v667 = vpop.permute.xlu0 %666
        %669 = vrot.lane.b32.xlu0 %v649, 16
        %v670 = vpop.permute.xlu0 %669
        %v671 = vsel %vm365, %v670, %v667
        %v674 = vsel %vm365, %v667, %v670
        %v675 = vmul.f32 %v674, %v373
        %v676 = vmul.f32 %v671, %v377
        %v677 = vpack.c.bf16 %v675, %v675
        %v678 = vpack.c.bf16 %v676, %v676
        %679 = vrot.lane.b32.xlu0 %v650, 15
        %v680 = vpop.permute.xlu0 %679
        %682 = vrot.lane.b32.xlu0 %v649, 15
        %v683 = vpop.permute.xlu0 %682
        %v684 = vsel %vm387, %v683, %v680
        %v687 = vsel %vm387, %v680, %v683
        %v688 = vmul.f32 %v687, %v395
        %v689 = vmul.f32 %v684, %v399
        %v690 = vpack.c.bf16 %v688, %v688
        %v691 = vpack.c.bf16 %v689, %v689
        %692 = vrot.lane.b32.xlu0 %v650, 1
        %v693 = vpop.permute.xlu0 %692
        %695 = vrot.lane.b32.xlu0 %v649, 1
        %v696 = vpop.permute.xlu0 %695
        %v697 = vsel %vm409, %v696, %v693
        %v700 = vsel %vm409, %v693, %v696
        %v701 = vmul.f32 %v700, %v417
        %v702 = vmul.f32 %v697, %v421
        %v703 = vpack.c.bf16 %v701, %v701
        %v704 = vpack.c.bf16 %v702, %v702
        %v705 = vmul.f32 %v649, %v429
        %v706 = vmul.f32 %v650, %v433
        %v707 = vpack.c.bf16 %v705, %v705
        %v708 = vpack.c.bf16 %v706, %v706
        %709 = vrot.lane.b32.xlu0 %v649, 127
        %v710 = vpop.permute.xlu0 %709
        %711 = vrot.lane.b32.xlu0 %v650, 127
        %v712 = vpop.permute.xlu0 %711
        %v713 = vsel %vm448, %v710, %v712
        %v717 = vsel %vm448, %v712, %v710
        %v718 = vmul.f32 %v713, %v457
        %v719 = vmul.f32 %v717, %v461
        %v720 = vpack.c.bf16 %v718, %v718
        %v721 = vpack.c.bf16 %v719, %v719
        %722 = vrot.lane.b32.xlu0 %v649, 113
        %v723 = vpop.permute.xlu0 %722
        %724 = vrot.lane.b32.xlu0 %v650, 113
        %v725 = vpop.permute.xlu0 %724
        %v726 = vsel %vm470, %v723, %v725
        %v730 = vsel %vm470, %v725, %v723
        %v731 = vmul.f32 %v726, %v479
        %v732 = vmul.f32 %v730, %v483
        %v733 = vpack.c.bf16 %v731, %v731
        %v734 = vpack.c.bf16 %v732, %v732
        %735 = vrot.lane.b32.xlu0 %v649, 112
        %v736 = vpop.permute.xlu0 %735
        %737 = vrot.lane.b32.xlu0 %v650, 112
        %v738 = vpop.permute.xlu0 %737
        %v739 = vsel %vm492, %v736, %v738
        %v743 = vsel %vm492, %v738, %v736
        %v744 = vmul.f32 %v739, %v501
        %v745 = vmul.f32 %v743, %v505
        %v746 = vpack.c.bf16 %v744, %v744
        %v747 = vpack.c.bf16 %v745, %v745
        %748 = vrot.lane.b32.xlu0 %v649, 111
        %v749 = vpop.permute.xlu0 %748
        %750 = vrot.lane.b32.xlu0 %v650, 111
        %v751 = vpop.permute.xlu0 %750
        %v752 = vsel %vm514, %v749, %v751
        %v756 = vsel %vm514, %v751, %v749
        %v757 = vmul.f32 %v752, %v523
        %v758 = vmul.f32 %v756, %v527
        %v759 = vpack.c.bf16 %v757, %v757
        %v760 = vpack.c.bf16 %v758, %v758
        %v763 = vrot.slane %v677, 4
        %v764 = vrot.slane %v678, 4
        %v767 = vrot.slane %v703, 4
        %v768 = vrot.slane %v704, 4
        %v771 = vrot.slane %v720, 4
        %v772 = vrot.slane %v721, 4
        %v775 = vrot.slane %v746, 4
        %v776 = vrot.slane %v747, 4
        %v779 = vsel %vm563, %v664, %v763
        %v783 = vsel %vm563, %v665, %v764
        %v787 = vsel %vm563, %v690, %v767
        %v791 = vsel %vm563, %v691, %v768
        %v795 = vsel %vm563, %v707, %v771
        %v799 = vsel %vm563, %v708, %v772
        %v803 = vsel %vm563, %v733, %v775
        %v807 = vsel %vm563, %v734, %v776
        %v809 = vld [vmem:[%s4] sm:$0xf]
        %v810 = vld [vmem:[%s5] sm:$0xff]
        %812 = vset.pattern.permute.xlu0 0
        %813 = vperm.xlu0 %812, %v810
        %v814 = vpop.permute.xlu0 %813
        %vm816 = vcmask 588800
        %v818 = vsel %vm816, %v809, 0
        %v821 = vsel %vm563, %v759, 0
        %v824 = vsel %vm563, %v760, 0
        %826 = vmatprep.subr.bf16.mxu0 %v783
        %827 = vmatpush1.bf16.msra.mxu0 %v779
        %828 = vmatprep.subr.bf16.mxu0 %v791
        %829 = vmatpush1.bf16.msra.mxu0 %v787
        %830 = vmatprep.subr.bf16.mxu0 %v799
        %831 = vmatpush1.bf16.msra.mxu0 %v795
        %832 = vmatprep.subr.bf16.mxu0 %v807
        %833 = vmatpush1.bf16.msra.mxu0 %v803
        %834 = vmatprep.subr.bf16.mxu0 %v824
        %835 = vmatpush1.bf16.msra.mxu0 %v821
        %836 = vmatprep.subr.bf16.mxu0 0
        %837 = vmatpush1.bf16.msra.mxu0 0
        %838 = vmatprep.subr.bf16.mxu0 0
        %839 = vmatpush1.bf16.msra.mxu0 0
        %840 = vmatprep.subr.bf16.mxu0 0
        %841 = vmatpush1.bf16.msra.mxu0 0
        %842 = vmatprep.subr.bf16.mxu0 0
        %843 = vmatpush1.bf16.msra.mxu0 0
        %844 = vmatprep.subr.bf16.mxu0 0
        %845 = vmatpush1.bf16.msra.mxu0 0
        %846 = vmatprep.subr.bf16.mxu0 0
        %847 = vmatpush1.bf16.msra.mxu0 0
        %848 = vmatprep.subr.bf16.mxu0 0
        %849 = vmatpush1.bf16.msra.mxu0 0
        %850 = vmatprep.subr.bf16.mxu0 0
        %851 = vmatpush1.bf16.msra.mxu0 0
        %852 = vmatprep.subr.bf16.mxu0 0
        %853 = vmatpush1.bf16.msra.mxu0 0
        %854 = vmatprep.subr.bf16.mxu0 0
        %855 = vmatpush1.bf16.msra.mxu0 0
        %856 = vmatprep.subr.bf16.mxu0 0
        %857 = vmatpush1.bf16.msra.mxu0 0
        %858 = vmatprep.mubr.bf16.mxu0 0
        %859 = vmatmul.mubr.bf16.gmra.mrb[0].mxu0 %v818
        %v860 = vpop.f32.mrb[0].mxu0
        %v861 = vadd.f32 %v814, %v860
        %v862 = vpop.f32.mrb[0].mxu0
        %v863 = vadd.f32 %v814, %v862
        %v864 = vpop.f32.mrb[0].mxu0
        %v865 = vpop.f32.mrb[0].mxu0
        %866 = vdwg.mxu0
        %v867 = vmax.f32 %v861, 0.0
        %v868 = vmax.f32 %v863, 0.0
        %v869 = vpack.c.bf16 %v867, %v867
        %v870 = vpack.c.bf16 %v868, %v868
        %v873 = vunpack.c.l.b16 %v869
        %v874 = vunpack.c.l.b16 %v870
        %v875 = vpack.c.b16 %v874, %v873
        %877 = vst [vmem:[%s314] sm:$0xff] %v875
        %v878 = vld [vmem:[%s6] sm:$0xf]
        %v880 = vpack.c.bf16 %v331, %v331
        %v881 = vpack.c.bf16 %v337, %v337
        %vm882 = vcmask 31744
        %v884 = vsel %vm882, %v878, 0
        %v887 = vsel %vm556, %v880, 0
        %v890 = vsel %vm556, %v881, 0
        %892 = vmatprep.subr.bf16.mxu0 %v890
        %893 = vmatpush1.bf16.msra.mxu0 %v887
        %894 = vmatprep.subr.bf16.mxu0 0
        %895 = vmatpush1.bf16.msra.mxu0 0
        %896 = vmatprep.subr.bf16.mxu0 0
        %897 = vmatpush1.bf16.msra.mxu0 0
        %898 = vmatprep.subr.bf16.mxu0 0
        %899 = vmatpush1.bf16.msra.mxu0 0
        %900 = vmatprep.subr.bf16.mxu0 0
        %901 = vmatpush1.bf16.msra.mxu0 0
        %902 = vmatprep.subr.bf16.mxu0 0
        %903 = vmatpush1.bf16.msra.mxu0 0
        %904 = vmatprep.subr.bf16.mxu0 0
        %905 = vmatpush1.bf16.msra.mxu0 0
        %906 = vmatprep.subr.bf16.mxu0 0
        %907 = vmatpush1.bf16.msra.mxu0 0
        %908 = vmatprep.subr.bf16.mxu0 0
        %909 = vmatpush1.bf16.msra.mxu0 0
        %910 = vmatprep.subr.bf16.mxu0 0
        %911 = vmatpush1.bf16.msra.mxu0 0
        %912 = vmatprep.subr.bf16.mxu0 0
        %913 = vmatpush1.bf16.msra.mxu0 0
        %914 = vmatprep.subr.bf16.mxu0 0
        %915 = vmatpush1.bf16.msra.mxu0 0
        %916 = vmatprep.subr.bf16.mxu0 0
        %917 = vmatpush1.bf16.msra.mxu0 0
        %918 = vmatprep.subr.bf16.mxu0 0
        %919 = vmatpush1.bf16.msra.mxu0 0
        %920 = vmatprep.subr.bf16.mxu0 0
        %921 = vmatpush1.bf16.msra.mxu0 0
        %922 = vmatprep.subr.bf16.mxu0 0
        %923 = vmatpush1.bf16.msra.mxu0 0
        %924 = vmatprep.mubr.bf16.mxu0 0
        %925 = vmatmul.mubr.bf16.gmra.mrb[0].mxu0 %v884
        %v926 = vpop.f32.mrb[0].mxu0
        %v927 = vadd.f32 0.0, %v926
        %v928 = vpop.f32.mrb[0].mxu0
        %v929 = vadd.f32 0.0, %v928
        %v930 = vpop.f32.mrb[0].mxu0
        %v931 = vpop.f32.mrb[0].mxu0
        %932 = vdwg.mxu0
        %v933 = vadd.f32 %v927, %v929
        %934 = vadd.xlane.f32.xlu0 %v933
        %v935 = vpop.xlane.xlu0 %934
        %v936 = vmul.f32 %v927, %v927
        %v937 = vmul.f32 %v929, %v929
        %v938 = vadd.f32 %v936, %v937
        %939 = vadd.xlane.f32.xlu0 %v938
        %v940 = vpop.xlane.xlu0 %939
        %v941 = vsel %vm409, %v935, %v940
        %vm942 = vcmask 15360
        %943 = vst.msk [vmem:[%s329] sm:$0xff] %vm942, %v941
        %s944 = sand.u32 %s184, 1
        %s945 = scalar_lea.sflag [#allocation4], %s944
        %s946 = sand.u32 %s184, 1
        %s947 = smul.addr %s946, 8
        %s948 = scalar_lea.vmem [#allocation5], %s947
        %p949 = scmp.lt.s32.totalorder %s24, 1
        %s950 = scalar_select %p949, %s24, 1
        %s951 = smul.addr %s950, 8
        %s952 = scalar_lea.vmem %s8, %s951
        // Predicated region
        $region53: #{tpu_custom_call.1} parent=47 // pred_check
          %p953 = pneg %p194
        $region54: #{tpu_custom_call.1} parent=47 // pred_check_branch
          %955 = sbr.rel (%p953) target = $region56
        $region55: #{tpu_custom_call.1} parent=47 // pred_region
          %s957 = ssub.s32 128, 128
          %958 = vsyncadd %s945, %s957
          %s959 = smul.addr %s24, 2
          %s960 = smul.addr %s959, 64
          %s961 = scalar_lea.hbm %s7, %s960
          %s963 = sshll.u32 %s948, 4
          %s964 = int_to_ptr.vmem [resolvable:$true] %s963
          %966 = dma.vmem_to_hbm [thread:$0]  %s964, 128, %s961, %s945
        $region56: #{tpu_custom_call.1} parent=47 // pred_fallthru
          _
        // Predicated region
        $region57: #{tpu_custom_call.1} parent=47 // pred_check
          %p967 = pneg %p220
        $region58: #{tpu_custom_call.1} parent=47 // pred_check_branch
          %969 = sbr.rel (%p967) target = $region60
        $region59: #{tpu_custom_call.1} parent=47 // pred_region
          _
        $region60: #{tpu_custom_call.1} parent=47 // pred_fallthru
          _
      $region48: #{tpu_custom_call.1} parent=5 // pred_fallthru
        _
      %p970 = scmp.le.s32.totalorder 2, %s19
      // Predicated region
      $region61: #{tpu_custom_call.1} parent=5 // pred_check
        %p971 = pneg %p970
      $region62: #{tpu_custom_call.1} parent=5 // pred_check_branch
        %973 = sbr.rel (%p971) target = $region64
      $region63: #{tpu_custom_call.1} parent=5 // pred_region
        %s974 = ssub.s32 %s19, 2
        // Predicated region
        $region65: #{tpu_custom_call.1} parent=63 // pred_check
          %p975 = pneg %p200
        $region66: #{tpu_custom_call.1} parent=63 // pred_check_branch
          %977 = sbr.rel (%p975) target = $region68
        $region67: #{tpu_custom_call.1} parent=63 // pred_region
          %s978 = sand.u32 %s185, 1
          %s979 = scalar_lea.sflag [#allocation4], %s978
          %s980 = sand.u32 %s185, 1
          %s981 = smul.addr %s980, 8
          %s982 = scalar_lea.vmem [#allocation5], %s981
          %983 = dma.done %s979, 128
        $region68: #{tpu_custom_call.1} parent=63 // pred_fallthru
          _
        // Predicated region
        $region69: #{tpu_custom_call.1} parent=63 // pred_check
          %p984 = pneg %p226
        $region70: #{tpu_custom_call.1} parent=63 // pred_check_branch
          %986 = sbr.rel (%p984) target = $region72
        $region71: #{tpu_custom_call.1} parent=63 // pred_region
          %p987 = scmp.lt.s32.totalorder %s25, 1
          %s988 = scalar_select %p987, %s25, 1
          %s989 = smul.addr %s988, 8
          %s990 = scalar_lea.vmem %s8, %s989
        $region72: #{tpu_custom_call.1} parent=63 // pred_fallthru
          _
      $region64: #{tpu_custom_call.1} parent=5 // pred_fallthru
        _
    $region6: #{tpu_custom_call.1} parent=1 // loop_footer
      %s23 = sadd.s32 1, %s19
    $region7: #{tpu_custom_call.1} parent=1 // loop_footer_branch
      %18 = sbr.rel target = $region3
    $region8: #{tpu_custom_call.1} parent=1 // loop_exit
      _
    %991 = vsyncpa [#allocation3], 1
    %s992 = scalar_lea.sflag [#allocation3], 1
    %993 = vsyncpa %s992, 1
    %994 = vsyncpa [#allocation4], 1
    %s995 = scalar_lea.sflag [#allocation4], 1
    %996 = vsyncpa %s995, 1

</llo_original>
